<compile_context>
chip_gen: v5e
topology: v5e:2x2
jax: 0.10.0
libtpu: 0.0.40
codegen_flags: <defaults>
</compile_context>

<pallas_src>
import functools

import jax
import jax.numpy as jnp
from jax import lax
from jax.experimental import pallas as pl
from jax.experimental.pallas import tpu as pltpu


def _hinge_partial_kernel(y_pred_ref, y_ref, out_ref, *, margin, batch, tile_b):
    """One grid step: hinge over a (tile_b, F) tile -> (8, F) partial sums."""
    i = pl.program_id(0)

    y_pred = y_pred_ref[...].astype(jnp.float32)
    y = y_ref[...].astype(jnp.float32)
    hinge = jnp.maximum(1.0 - y * (y_pred - margin), 0.0)

    if batch % tile_b != 0:
        # Last tile overruns the batch axis: zero the padded rows.
        row = i * tile_b + lax.broadcasted_iota(jnp.int32, hinge.shape, 0)
        hinge = jnp.where(row < batch, hinge, 0.0)

    feat = hinge.shape[-1]
    # (tile_b, F) -> (tile_b//8, 8, F) is a pure sublane-group view, so the
    # axis-0 sum lowers to plain vreg adds (no XLU traffic in the hot loop).
    out_ref[...] = jnp.sum(hinge.reshape(tile_b // 8, 8, feat), axis=0)


def _hinge_small_kernel(y_pred_ref, y_ref, out_ref, *, margin):
    """Fallback for tiny batches (< 8 rows): single block, direct reduce."""
    y_pred = y_pred_ref[...].astype(jnp.float32)
    y = y_ref[...].astype(jnp.float32)
    total = jnp.sum(jnp.maximum(1.0 - y * (y_pred - margin), 0.0))
    out_ref[...] = total.reshape(1, 1)


def hinge_loss(y_pred, y, margin=0.0, *, tile_b=None):
    """Pallas implementation of HingeLoss.forward for 2-D (batch, features)."""
    assert y_pred.shape == y.shape
    assert y_pred.ndim == 2, "layout: (batch, features)"
    batch, feat = y_pred.shape
    margin = float(margin)

    if batch < 8:
        # Tiny batch: tiling buys nothing; one block is fine and always fits.
        total = pl.pallas_call(
            functools.partial(_hinge_small_kernel, margin=margin),
            out_shape=jax.ShapeDtypeStruct((1, 1), jnp.float32),
            in_specs=[
                pl.BlockSpec(y_pred.shape, lambda: (0, 0)),
                pl.BlockSpec(y.shape, lambda: (0, 0)),
            ],
            out_specs=pl.BlockSpec((1, 1), lambda: (0, 0)),
        )(y_pred, y)
        return (total[0, 0] / batch).astype(jnp.float32)

    itemsize = max(y_pred.dtype.itemsize, y.dtype.itemsize)

    if tile_b is None:
        # Largest tile that keeps 2 inputs x 2 pipeline buffers comfortably
        # inside VMEM on every generation (v7x has only 64 MiB physical).
        target_tile_bytes = 4 * 1024 * 1024
        tile_b = max(8, target_tile_bytes // max(1, feat * itemsize))
    tile_b = max(8, min(int(tile_b), batch))
    tile_b = (tile_b // 8) * 8          # sublane-aligned
    num_tiles = -(-batch // tile_b)

    # 2 inputs x 2 pipeline buffers + f32 partial-sum output, with headroom.
    vmem_needed = 2 * 2 * tile_b * feat * itemsize + 2 * 8 * feat * 4
    vmem_limit = int(min(48 * 2**20, max(32 * 2**20, 2 * vmem_needed)))

    kernel = functools.partial(
        _hinge_partial_kernel, margin=margin, batch=batch, tile_b=tile_b
    )

    partials = pl.pallas_call(
        kernel,
        out_shape=jax.ShapeDtypeStruct((num_tiles * 8, feat), jnp.float32),
        grid=(num_tiles,),
        in_specs=[
            pl.BlockSpec((tile_b, feat), lambda i: (i, 0)),
            pl.BlockSpec((tile_b, feat), lambda i: (i, 0)),
        ],
        out_specs=pl.BlockSpec((8, feat), lambda i: (i, 0)),
        compiler_params=pltpu.CompilerParams(
            dimension_semantics=("parallel",),
            vmem_limit_bytes=vmem_limit,
        ),
    )(y_pred, y)

    # Single tiny cross-lane reduction + mean, outside the hot loop.
    return (jnp.sum(partials) / batch).astype(jnp.float32)


if __name__ == "__main__":
    key = jax.random.PRNGKey(0)
    k1, k2 = jax.random.split(key)

    margin = 0.1

    def ref_loss(yp, yy, m):
        yp32 = yp.astype(jnp.float32)
        yy32 = yy.astype(jnp.float32)
        return jnp.sum(jnp.maximum(1.0 - yy32 * (yp32 - m), 0.0)) / yp.shape[0]

    # Small, TPU-friendly shapes: batch=256, features=128.
    batch, feat = 256, 128
    y_pred = jax.random.normal(k1, (batch, feat), dtype=jnp.float32)
    y = jnp.where(jax.random.uniform(k2, (batch, feat)) > 0.5, 1.0, -1.0).astype(
        jnp.float32
    )

    # 1) Main tiled path; force a multi-step grid (tile_b=64 -> 4 steps).
    loss = jax.block_until_ready(hinge_loss(y_pred, y, margin=margin, tile_b=64))
    ref = ref_loss(y_pred, y, margin)
    assert jnp.allclose(loss, ref, rtol=1e-5, atol=1e-5), (loss, ref)

    # 2) Ragged batch (not a multiple of the tile): exercises in-kernel masking.
    loss2 = jax.block_until_ready(
        hinge_loss(y_pred[:100], y[:100], margin=margin, tile_b=32)
    )
    ref2 = ref_loss(y_pred[:100], y[:100], margin)
    assert jnp.allclose(loss2, ref2, rtol=1e-5, atol=1e-5), (loss2, ref2)

    # 3) bf16 inputs streamed natively (half the HBM bytes), upcast in-kernel.
    yp_bf = y_pred.astype(jnp.bfloat16)
    y_bf = y.astype(jnp.bfloat16)
    loss3 = jax.block_until_ready(hinge_loss(yp_bf, y_bf, margin=margin))
    ref3 = ref_loss(yp_bf, y_bf, margin)
    assert jnp.allclose(loss3, ref3, rtol=2e-2, atol=2e-2), (loss3, ref3)

    # 4) Tiny-batch fallback path.
    loss4 = jax.block_until_ready(hinge_loss(y_pred[:4], y[:4], margin=margin))
    ref4 = ref_loss(y_pred[:4], y[:4], margin)
    assert jnp.allclose(loss4, ref4, rtol=1e-5, atol=1e-5), (loss4, ref4)

    print("KERNEL_OK")
</pallas_src>

<mosaic_0001>
module attributes {stable_mosaic.version = 11 : i64} {
  func.func @_hinge_partial_kernel(%arg0: i32, %arg1: memref<64x128xf32, #tpu.memory_space<vmem>>, %arg2: memref<64x128xf32, #tpu.memory_space<vmem>>, %arg3: memref<8x128xf32, #tpu.memory_space<vmem>>) attributes {dimension_semantics = [#tpu.dimension_semantics<parallel>], iteration_bounds = array<i64: 4>, scalar_prefetch = 0 : i64, scratch_operands = 0 : i64, tpu.core_type = #tpu.core_type<tc>, window_params = [{transform_indices = @transform_0, window_bounds = array<i64: 64, 128>}, {transform_indices = @transform_1, window_bounds = array<i64: 64, 128>}, {transform_indices = @transform_2, window_bounds = array<i64: 8, 128>}]} {
    %c0 = arith.constant 0 : index
    %c0_0 = arith.constant 0 : index
    %0 = vector.load %arg1[%c0, %c0_0] : memref<64x128xf32, #tpu.memory_space<vmem>>, vector<64x128xf32>
    %c0_1 = arith.constant 0 : index
    %c0_2 = arith.constant 0 : index
    %1 = vector.load %arg2[%c0_1, %c0_2] : memref<64x128xf32, #tpu.memory_space<vmem>>, vector<64x128xf32>
    %cst = arith.constant 1.000000e-01 : f32
    %2 = vector.broadcast %cst : f32 to vector<64x128xf32>
    %3 = arith.subf %0, %2 : vector<64x128xf32>
    %4 = arith.mulf %1, %3 : vector<64x128xf32>
    %cst_3 = arith.constant 1.000000e+00 : f32
    %5 = vector.broadcast %cst_3 : f32 to vector<64x128xf32>
    %6 = arith.subf %5, %4 : vector<64x128xf32>
    %cst_4 = arith.constant 0.000000e+00 : f32
    %7 = vector.broadcast %cst_4 : f32 to vector<64x128xf32>
    %8 = arith.maximumf %6, %7 : vector<64x128xf32>
    %9 = vector.shape_cast %8 : vector<64x128xf32> to vector<8x8x128xf32>
    %cst_5 = arith.constant dense<0.000000e+00> : vector<8x128xf32>
    %10 = vector.multi_reduction <add>, %9, %cst_5 [0] : vector<8x8x128xf32> to vector<8x128xf32>
    %c0_6 = arith.constant 0 : index
    %c0_7 = arith.constant 0 : index
    %11 = vector.load %arg3[%c0_6, %c0_7] : memref<8x128xf32, #tpu.memory_space<vmem>>, vector<8x128xf32>
    tpu.vector_store %arg3[%c0_6, %c0_7], %10 {strides = array<i32>} : memref<8x128xf32, #tpu.memory_space<vmem>>, vector<8x128xf32>,
    return
  }
  func.func @transform_0(%arg0: i32) -> (i32, i32) {
    %c0_i32 = arith.constant 0 : i32
    %c0_i32_0 = arith.constant 0 : i32
    return %arg0, %c0_i32 : i32, i32
  }
  func.func @transform_1(%arg0: i32) -> (i32, i32) {
    %c0_i32 = arith.constant 0 : i32
    %c0_i32_0 = arith.constant 0 : i32
    return %arg0, %c0_i32 : i32, i32
  }
  func.func @transform_2(%arg0: i32) -> (i32, i32) {
    %c0_i32 = arith.constant 0 : i32
    %c0_i32_0 = arith.constant 0 : i32
    return %arg0, %c0_i32 : i32, i32
  }
}

</mosaic_0001>

<llo_original>
// kernel: tpu_custom_call.1
$region0: #{tpu_custom_call.1}
  #allocation0 [shape = 'u32[]', space=smem, size = 0x4, offset = 0x4, fixed_abs, tag = 'smem constant byte address 0x4 - core index']
  #allocation1 [shape = 'u32[72,128]{1,0:T(1,128)}', space=vmem, size = 0x9000, scoped, tag = 'internal scratch']
  %s0 = inlined_call_operand.hbm [shape: f32[256,128], index: 0, kind: input, shape index: {}]
  %s1 = inlined_call_operand.hbm [shape: f32[256,128], index: 1, kind: input, shape index: {}]
  %s2 = inlined_call_operand.hbm [shape: f32[32,128], index: 2, kind: output, shape index: {}]
  %s3 = sld [smem:[#allocation0]]
  $region49: #{tpu_custom_call.1} parent=0
    _
  %s5 = ssub.s32 1, %s3
  %s6 = scalar_select 0, %s5, %s3
  $region1: #{tpu_custom_call.1} parent=0
    #allocation2 [shape = 'u8[65536]{0}', space=vmem, size = 0x10000, scoped, tag = 'input window, operand 0']
    #allocation3 [shape = 's32[2]{0}', space=sflag, size = 0x8, scoped, tag = 'scoped memory for tpu_custom_call.1']
    #allocation4 [shape = 's32[2]{0}', space=sflag, size = 0x8, scoped, tag = 'scoped memory for tpu_custom_call.1']
    #allocation5 [shape = 'u8[65536]{0}', space=vmem, size = 0x10000, scoped, tag = 'input window, operand 1']
    #allocation6 [shape = 's32[2]{0}', space=sflag, size = 0x8, scoped, tag = 'scoped memory for tpu_custom_call.1']
    #allocation7 [shape = 'u8[8192]{0}', space=vmem, size = 0x2000, scoped, tag = 'output window, operand 0']
    %7 = vsyncpa [#allocation3], 0
    %s8 = scalar_lea.sflag [#allocation3], 1
    %9 = vsyncpa %s8, 0
    %10 = vsyncpa [#allocation6], 0
    %s11 = scalar_lea.sflag [#allocation6], 1
    %12 = vsyncpa %s11, 0
    %13 = vsyncpa [#allocation4], 0
    %s14 = scalar_lea.sflag [#allocation4], 1
    %15 = vsyncpa %s14, 0
    loop: start=0, step=1, limit=6
    $region2: #{tpu_custom_call.1} parent=1 // loop_pre_header
      _
    $region3: #{tpu_custom_call.1} parent=1 // loop_header
      %s17 = sphi 0, %s21
      %p18 = scmp.ge.s32.totalorder %s17, 6
      %s27 = sphi 0, %s29
      %s30 = sphi 0, %s27
      %s31 = sphi 0, %s30
      %s47 = sphi 0, %s31
      %s53 = sphi 0, %s55
      %s56 = sphi 0, %s53
      %s57 = sphi 0, %s56
      %s73 = sphi 0, %s57
      %s79 = sphi 0, %s81
      %s82 = sphi 0, %s79
      %s83 = sphi 0, %s82
      %s99 = sphi 0, %s83
    $region4: #{tpu_custom_call.1} parent=1 // loop_header_branch
      %20 = sbr.rel (%p18) target = $region8
    $region5: #{tpu_custom_call.1} parent=1 // loop_body
      %s22 = ssub.s32 %s17, 1
      %s23 = ssub.s32 %s17, 2
      %s24 = sadd.s32 %s17, 1
      %s25 = ssub.s32 %s17, %s24
      %p26 = scmp.eq.s32.totalorder %s25, 0
      %s28 = sadd.s32 %s27, 1
      %s29 = scalar_select %p26, %s27, %s28
      %p32 = pneg %p26
      %p33 = scmp.eq.s32.totalorder %s17, 3
      %p34 = por %p32, %p33
      %p35 = scmp.ne.s32.totalorder %s27, %s30
      %p36 = scmp.eq.s32.totalorder %s17, 0
      %p37 = por %p35, %p36
      %p38 = scmp.ne.s32.totalorder %s27, %s30
      %p39 = scmp.eq.s32.totalorder %s22, 3
      %p40 = por %p38, %p39
      %p41 = scmp.ne.s32.totalorder %s30, %s31
      %p42 = scmp.eq.s32.totalorder %s22, 0
      %p43 = por %p41, %p42
      %p44 = scmp.ne.s32.totalorder %s30, %s31
      %p45 = scmp.eq.s32.totalorder %s23, 3
      %p46 = por %p44, %p45
      %p48 = scmp.ne.s32.totalorder %s31, %s47
      %p49 = scmp.eq.s32.totalorder %s23, 0
      %p50 = por %p48, %p49
      %s51 = ssub.s32 %s17, %s24
      %p52 = scmp.eq.s32.totalorder %s51, 0
      %s54 = sadd.s32 %s53, 1
      %s55 = scalar_select %p52, %s53, %s54
      %p58 = pneg %p52
      %p59 = scmp.eq.s32.totalorder %s17, 3
      %p60 = por %p58, %p59
      %p61 = scmp.ne.s32.totalorder %s53, %s56
      %p62 = scmp.eq.s32.totalorder %s17, 0
      %p63 = por %p61, %p62
      %p64 = scmp.ne.s32.totalorder %s53, %s56
      %p65 = scmp.eq.s32.totalorder %s22, 3
      %p66 = por %p64, %p65
      %p67 = scmp.ne.s32.totalorder %s56, %s57
      %p68 = scmp.eq.s32.totalorder %s22, 0
      %p69 = por %p67, %p68
      %p70 = scmp.ne.s32.totalorder %s56, %s57
      %p71 = scmp.eq.s32.totalorder %s23, 3
      %p72 = por %p70, %p71
      %p74 = scmp.ne.s32.totalorder %s57, %s73
      %p75 = scmp.eq.s32.totalorder %s23, 0
      %p76 = por %p74, %p75
      %s77 = ssub.s32 %s17, %s24
      %p78 = scmp.eq.s32.totalorder %s77, 0
      %s80 = sadd.s32 %s79, 1
      %s81 = scalar_select %p78, %s79, %s80
      %p84 = pneg %p78
      %p85 = scmp.eq.s32.totalorder %s17, 3
      %p86 = por %p84, %p85
      %p87 = scmp.ne.s32.totalorder %s79, %s82
      %p88 = scmp.eq.s32.totalorder %s17, 0
      %p89 = por %p87, %p88
      %p90 = scmp.ne.s32.totalorder %s79, %s82
      %p91 = scmp.eq.s32.totalorder %s22, 3
      %p92 = por %p90, %p91
      %p93 = scmp.ne.s32.totalorder %s82, %s83
      %p94 = scmp.eq.s32.totalorder %s22, 0
      %p95 = por %p93, %p94
      %p96 = scmp.ne.s32.totalorder %s82, %s83
      %p97 = scmp.eq.s32.totalorder %s23, 3
      %p98 = por %p96, %p97
      %p100 = scmp.ne.s32.totalorder %s83, %s99
      %p101 = scmp.eq.s32.totalorder %s23, 0
      %p102 = por %p100, %p101
      %p103 = scmp.le.s32.totalorder 1, %s17
      %p104 = scmp.lt.s32.totalorder %s17, 5
      %p105 = pnand %p103, %p104
      %p106 = pneg %p105
      // Predicated region
      $region9: #{tpu_custom_call.1} parent=5 // pred_check
        _
      $region10: #{tpu_custom_call.1} parent=5 // pred_check_branch
        %108 = sbr.rel (%p105) target = $region12
      $region11: #{tpu_custom_call.1} parent=5 // pred_region
        %s109 = ssub.s32 %s17, 1
      $region12: #{tpu_custom_call.1} parent=5 // pred_fallthru
        _
      %p110 = scmp.lt.s32.totalorder %s17, 4
      // Predicated region
      $region13: #{tpu_custom_call.1} parent=5 // pred_check
        %p111 = pneg %p110
      $region14: #{tpu_custom_call.1} parent=5 // pred_check_branch
        %113 = sbr.rel (%p111) target = $region16
      $region15: #{tpu_custom_call.1} parent=5 // pred_region
        // Predicated region
        $region17: #{tpu_custom_call.1} parent=15 // pred_check
          %p114 = pneg %p37
        $region18: #{tpu_custom_call.1} parent=15 // pred_check_branch
          %116 = sbr.rel (%p114) target = $region20
        $region19: #{tpu_custom_call.1} parent=15 // pred_region
          %s117 = sand.u32 %s27, 1
          %s118 = scalar_lea.sflag [#allocation3], %s117
          %s119 = sand.u32 %s27, 1
          %s120 = smul.addr %s119, 64
          %s121 = scalar_lea.vmem [#allocation2], %s120
          %s122 = smul.u32 8, %s17
          %124 = vsyncadd %s118, 0
          %s125 = smul.addr %s122, 8
          %s126 = scalar_lea.hbm %s0, %s125
          %s127 = sshll.u32 %s126, 4
          %s128 = int_to_ptr.hbm [resolvable:$true] %s127
          %s129 = sshll.u32 %s121, 4
          %s130 = int_to_ptr.vmem [resolvable:$true] %s129
          %135 = dma.hbm_to_vmem [thread:$0]  %s128, 1024, %s130, %s118, 128, 128, 8
        $region20: #{tpu_custom_call.1} parent=15 // pred_fallthru
          _
        // Predicated region
        $region21: #{tpu_custom_call.1} parent=15 // pred_check
          %p136 = pneg %p63
        $region22: #{tpu_custom_call.1} parent=15 // pred_check_branch
          %138 = sbr.rel (%p136) target = $region24
        $region23: #{tpu_custom_call.1} parent=15 // pred_region
          %s139 = sand.u32 %s53, 1
          %s140 = scalar_lea.sflag [#allocation6], %s139
          %s141 = sand.u32 %s53, 1
          %s142 = smul.addr %s141, 64
          %s143 = scalar_lea.vmem [#allocation5], %s142
          %s144 = smul.u32 8, %s17
          %146 = vsyncadd %s140, 0
          %s147 = smul.addr %s144, 8
          %s148 = scalar_lea.hbm %s1, %s147
          %s149 = sshll.u32 %s148, 4
          %s150 = int_to_ptr.hbm [resolvable:$true] %s149
          %s151 = sshll.u32 %s143, 4
          %s152 = int_to_ptr.vmem [resolvable:$true] %s151
          %157 = dma.hbm_to_vmem [thread:$0]  %s150, 1024, %s152, %s140, 128, 128, 8
        $region24: #{tpu_custom_call.1} parent=15 // pred_fallthru
          _
      $region16: #{tpu_custom_call.1} parent=5 // pred_fallthru
        _
      %p158 = scmp.le.s32.totalorder 1, %s17
      %p159 = scmp.lt.s32.totalorder %s17, 5
      %p160 = pnand %p158, %p159
      %p161 = pneg %p160
      // Predicated region
      $region25: #{tpu_custom_call.1} parent=5 // pred_check
        _
      $region26: #{tpu_custom_call.1} parent=5 // pred_check_branch
        %163 = sbr.rel (%p160) target = $region28
      $region27: #{tpu_custom_call.1} parent=5 // pred_region
        %s164 = ssub.s32 %s17, 1
        %s165 = sand.u32 %s30, 1
        %s166 = scalar_lea.sflag [#allocation3], %s165
        %s167 = sand.u32 %s30, 1
        %s168 = smul.addr %s167, 64
        %s169 = scalar_lea.vmem [#allocation2], %s168
        // Predicated region
        $region29: #{tpu_custom_call.1} parent=27 // pred_check
          %p170 = pneg %p43
        $region30: #{tpu_custom_call.1} parent=27 // pred_check_branch
          %172 = sbr.rel (%p170) target = $region32
        $region31: #{tpu_custom_call.1} parent=27 // pred_region
          %174 = dma.done %s166, 1024
        $region32: #{tpu_custom_call.1} parent=27 // pred_fallthru
          _
        %s175 = sand.u32 %s56, 1
        %s176 = scalar_lea.sflag [#allocation6], %s175
        %s177 = sand.u32 %s56, 1
        %s178 = smul.addr %s177, 64
        %s179 = scalar_lea.vmem [#allocation5], %s178
        // Predicated region
        $region33: #{tpu_custom_call.1} parent=27 // pred_check
          %p180 = pneg %p69
        $region34: #{tpu_custom_call.1} parent=27 // pred_check_branch
          %182 = sbr.rel (%p180) target = $region36
        $region35: #{tpu_custom_call.1} parent=27 // pred_region
          %184 = dma.done %s176, 1024
        $region36: #{tpu_custom_call.1} parent=27 // pred_fallthru
          _
        %s185 = sand.u32 %s30, 1
        %s186 = scalar_lea.sflag [#allocation3], %s185
        %s187 = sand.u32 %s30, 1
        %s188 = smul.addr %s187, 64
        %s189 = scalar_lea.vmem [#allocation2], %s188
        %p190 = pneg %p43
        %p191 = pneg %p40
        %s192 = sand.u32 %s56, 1
        %s193 = scalar_lea.sflag [#allocation6], %s192
        %s194 = sand.u32 %s56, 1
        %s195 = smul.addr %s194, 64
        %s196 = scalar_lea.vmem [#allocation5], %s195
        %p197 = pneg %p69
        %p198 = pneg %p66
        %p199 = pneg %p95
        %p200 = pneg %p92
        %s201 = sand.u32 %s82, 1
        %s202 = scalar_lea.sflag [#allocation4], %s201
        %s203 = sand.u32 %s82, 1
        %s204 = smul.addr %s203, 8
        %s205 = scalar_lea.vmem [#allocation7], %s204
        %s206 = smul.u32 8, %s22
        %s207 = smul.u32 8, %s22
        %v208 = vld [vmem:[%s169] sm:$0xff]
        %v209 = vld [vmem:[%s169 + $0x8] sm:$0xff]
        %v210 = vld [vmem:[%s169 + $0x10] sm:$0xff]
        %v211 = vld [vmem:[%s169 + $0x18] sm:$0xff]
        %v212 = vld [vmem:[%s169 + $0x20] sm:$0xff]
        %v213 = vld [vmem:[%s169 + $0x28] sm:$0xff]
        %v214 = vld [vmem:[%s169 + $0x30] sm:$0xff]
        %v215 = vld [vmem:[%s169 + $0x38] sm:$0xff]
        %v216 = vld [vmem:[%s179] sm:$0xff]
        %v217 = vld [vmem:[%s179 + $0x8] sm:$0xff]
        %v218 = vld [vmem:[%s179 + $0x10] sm:$0xff]
        %v219 = vld [vmem:[%s179 + $0x18] sm:$0xff]
        %v220 = vld [vmem:[%s179 + $0x20] sm:$0xff]
        %v221 = vld [vmem:[%s179 + $0x28] sm:$0xff]
        %v222 = vld [vmem:[%s179 + $0x30] sm:$0xff]
        %v223 = vld [vmem:[%s179 + $0x38] sm:$0xff]
        %v224 = vsub.f32 %v208, 0.1
        %v225 = vsub.f32 %v209, 0.1
        %v226 = vsub.f32 %v210, 0.1
        %v227 = vsub.f32 %v211, 0.1
        %v228 = vsub.f32 %v212, 0.1
        %v229 = vsub.f32 %v213, 0.1
        %v230 = vsub.f32 %v214, 0.1
        %v231 = vsub.f32 %v215, 0.1
        %v232 = vmul.f32 %v216, %v224
        %v233 = vmul.f32 %v217, %v225
        %v234 = vmul.f32 %v218, %v226
        %v235 = vmul.f32 %v219, %v227
        %v236 = vmul.f32 %v220, %v228
        %v237 = vmul.f32 %v221, %v229
        %v238 = vmul.f32 %v222, %v230
        %v239 = vmul.f32 %v223, %v231
        %v240 = vsub.f32 1.0, %v232
        %v241 = vsub.f32 1.0, %v233
        %v242 = vsub.f32 1.0, %v234
        %v243 = vsub.f32 1.0, %v235
        %v244 = vsub.f32 1.0, %v236
        %v245 = vsub.f32 1.0, %v237
        %v246 = vsub.f32 1.0, %v238
        %v247 = vsub.f32 1.0, %v239
        %v248 = vmax.f32 %v240, 0.0
        %v249 = vmax.f32 %v241, 0.0
        %v250 = vmax.f32 %v242, 0.0
        %v251 = vmax.f32 %v243, 0.0
        %v252 = vmax.f32 %v244, 0.0
        %v253 = vmax.f32 %v245, 0.0
        %v254 = vmax.f32 %v246, 0.0
        %v255 = vmax.f32 %v247, 0.0
        %v256 = vadd.f32 %v248, %v249
        %v257 = vadd.f32 %v256, %v250
        %v258 = vadd.f32 %v257, %v251
        %v259 = vadd.f32 %v258, %v252
        %v260 = vadd.f32 %v259, %v253
        %v261 = vadd.f32 %v260, %v254
        %v262 = vadd.f32 %v261, %v255
        %263 = vst [vmem:[%s205] sm:$0xff] %v262
        %s264 = sand.u32 %s82, 1
        %s265 = scalar_lea.sflag [#allocation4], %s264
        %s266 = sand.u32 %s82, 1
        %s267 = smul.addr %s266, 8
        %s268 = scalar_lea.vmem [#allocation7], %s267
        // Predicated region
        $region37: #{tpu_custom_call.1} parent=27 // pred_check
          %p269 = pneg %p92
        $region38: #{tpu_custom_call.1} parent=27 // pred_check_branch
          %271 = sbr.rel (%p269) target = $region40
        $region39: #{tpu_custom_call.1} parent=27 // pred_region
          %273 = vsyncadd %s265, 0
          %s274 = smul.addr %s22, 8
          %s275 = scalar_lea.hbm %s2, %s274
          %s277 = sshll.u32 %s268, 4
          %s278 = int_to_ptr.vmem [resolvable:$true] %s277
          %s279 = sshll.u32 %s275, 4
          %s280 = int_to_ptr.hbm [resolvable:$true] %s279
          %282 = dma.vmem_to_hbm [thread:$0]  %s278, 128, %s280, %s265
        $region40: #{tpu_custom_call.1} parent=27 // pred_fallthru
          _
      $region28: #{tpu_custom_call.1} parent=5 // pred_fallthru
        _
      %p283 = scmp.le.s32.totalorder 2, %s17
      // Predicated region
      $region41: #{tpu_custom_call.1} parent=5 // pred_check
        %p284 = pneg %p283
      $region42: #{tpu_custom_call.1} parent=5 // pred_check_branch
        %286 = sbr.rel (%p284) target = $region44
      $region43: #{tpu_custom_call.1} parent=5 // pred_region
        %s287 = ssub.s32 %s17, 2
        // Predicated region
        $region45: #{tpu_custom_call.1} parent=43 // pred_check
          %p288 = pneg %p98
        $region46: #{tpu_custom_call.1} parent=43 // pred_check_branch
          %290 = sbr.rel (%p288) target = $region48
        $region47: #{tpu_custom_call.1} parent=43 // pred_region
          %s291 = sand.u32 %s83, 1
          %s292 = scalar_lea.sflag [#allocation4], %s291
          %s293 = sand.u32 %s83, 1
          %s294 = smul.addr %s293, 8
          %s295 = scalar_lea.vmem [#allocation7], %s294
          %297 = dma.done %s292, 128
        $region48: #{tpu_custom_call.1} parent=43 // pred_fallthru
          _
      $region44: #{tpu_custom_call.1} parent=5 // pred_fallthru
        _
    $region6: #{tpu_custom_call.1} parent=1 // loop_footer
      %s21 = sadd.s32 1, %s17
    $region7: #{tpu_custom_call.1} parent=1 // loop_footer_branch
      %16 = sbr.rel target = $region3
    $region8: #{tpu_custom_call.1} parent=1 // loop_exit
      _
    %298 = vsyncpa [#allocation3], 1
    %s299 = scalar_lea.sflag [#allocation3], 1
    %300 = vsyncpa %s299, 1
    %301 = vsyncpa [#allocation6], 1
    %s302 = scalar_lea.sflag [#allocation6], 1
    %303 = vsyncpa %s302, 1
    %304 = vsyncpa [#allocation4], 1
    %s305 = scalar_lea.sflag [#allocation4], 1
    %306 = vsyncpa %s305, 1

</llo_original>
